<compile_context>
chip_gen: v5e
topology: v5e:2x2
jax: 0.10.0
libtpu: 0.0.40
codegen_flags: <defaults>
</compile_context>

<pallas_src>
import functools

import jax
import jax.numpy as jnp
from jax.experimental import pallas as pl
from jax.experimental.pallas import tpu as pltpu


def _bimlp_kernel(x_ref, w1_ref, b1_ref, w2_ref, b2_ref, o_ref):
    # linear_1: (tm, n_in) @ (n_in, n_mid) + (1, n_mid), f32 accumulation on MXU.
    h = jnp.dot(x_ref[...], w1_ref[...],
                preferred_element_type=jnp.float32) + b1_ref[...].astype(jnp.float32)
    # activation_1: LeakyReLU(negative_slope=0.1).  Kept in f32 on the VPU
    # (v5e VPU has no bf16 compare/select path).
    h = jnp.where(h >= 0, h, 0.1 * h)
    # dropout: SharedDropout with p=0 -> identity (inference / p=0 path).
    # TODO(synk): SharedDropout with p>0 (row-shared Bernoulli mask) not emitted;
    #             module default is p=0 which is the identity.
    # linear_2: (tm, n_mid) @ (n_mid, n_out) + (1, n_out).
    # Downcast to the input dtype so the second matmul runs at native MXU width
    # when I/O is bf16; identity (stays f32) when x is f32.
    y = jnp.dot(h.astype(x_ref.dtype), w2_ref[...],
                preferred_element_type=jnp.float32) + b2_ref[...].astype(jnp.float32)
    # activation_2: Identity
    # TODO(synk): lane-dense output relayout ((tm, 32) -> (tm/4, 128)) skipped;
    #             profile-guided experiment, HBM slab is already contiguous.
    o_ref[...] = y.astype(o_ref.dtype)


def _round_up(a, b):
    return (a + b - 1) // b * b


@functools.partial(jax.jit, static_argnames=("tm",))
def bimlp_forward(x, w1_t, b1, w2_t, b2, *, tm=512):
    """x: (..., n_in) -> (..., n_out), matching BiMLP.forward semantics."""
    orig_shape = x.shape
    n_in = orig_shape[-1]
    n_mid = w1_t.shape[1]
    n_out = w2_t.shape[1]

    x2d = x.reshape(-1, n_in)
    M = x2d.shape[0]

    # Sublane alignment for the second-minor dim of the streamed (tm, n_in) /
    # (tm, n_out) tiles: 8 rows for 4-byte dtypes, 16 for 2-byte (bf16) packing.
    row_align = 8 if jnp.dtype(x.dtype).itemsize >= 4 else 16

    # Effective row tile: as large as requested (big streaming DMAs, full MXU
    # LHS passes), but no larger than the (aligned) problem size.
    tm_eff = max(row_align, min(tm, _round_up(M, row_align)))
    # v7x megacore: keep >= 2 grid steps when the work can be split, so both
    # TensorCores get a share of the "parallel" axis (no effect on v5e/v6e).
    if _round_up(M, tm_eff) // tm_eff < 2 and M > row_align:
        tm_eff = max(row_align, _round_up(pl.cdiv(M, 2), row_align))

    # Tail handling: pad M up to a multiple of the tile; padded rows are
    # computed and then sliced off (no divisibility assert on M).
    M_pad = _round_up(M, tm_eff)
    if M_pad != M:
        x2d = jnp.pad(x2d, ((0, M_pad - M), (0, 0)))

    grid = (M_pad // tm_eff,)

    # VMEM budget per step (double-buffered x/out + single-buffered weights):
    #   2*tm_eff*(n_in+n_out)*itemsize + (n_in*n_mid + n_mid*n_out + n_mid + n_out)*itemsize
    # e.g. tm=512, n_in=n_out=32, f32  ->  ~0.3 MiB, far below the default
    # 32 MiB scoped VMEM (and v7x's 64 MiB physical), so vmem_limit_bytes is
    # left at its default.  Re-derive if the feature dims grow.

    resident = pl.Buffered(buffer_count=1)  # grid-invariant: no double buffering

    out2d = pl.pallas_call(
        _bimlp_kernel,
        out_shape=jax.ShapeDtypeStruct((M_pad, n_out), x.dtype),
        grid_spec=pltpu.PrefetchScalarGridSpec(
            num_scalar_prefetch=0,
            grid=grid,
            in_specs=[
                pl.BlockSpec((tm_eff, n_in), lambda i: (i, 0)),        # x tile (streamed)
                pl.BlockSpec((n_in, n_mid), lambda i: (0, 0),
                             pipeline_mode=resident),                   # W1^T (resident)
                pl.BlockSpec((1, n_mid), lambda i: (0, 0),
                             pipeline_mode=resident),                   # b1
                pl.BlockSpec((n_mid, n_out), lambda i: (0, 0),
                             pipeline_mode=resident),                   # W2^T (resident)
                pl.BlockSpec((1, n_out), lambda i: (0, 0),
                             pipeline_mode=resident),                   # b2
            ],
            out_specs=pl.BlockSpec((tm_eff, n_out), lambda i: (i, 0)),
        ),
        compiler_params=pltpu.CompilerParams(
            dimension_semantics=("parallel",)),
    )(x2d, w1_t, b1, w2_t, b2)

    if M_pad != M:
        out2d = out2d[:M]
    return out2d.reshape(*orig_shape[:-1], n_out)


def _orthogonal(key, rows, cols, dtype=jnp.float32):
    """Deterministic orthogonal init (QR of a Gaussian), like nn.init.orthogonal_."""
    flat = jax.random.normal(key, (max(rows, cols), min(rows, cols)), dtype=jnp.float32)
    q, r = jnp.linalg.qr(flat)
    q = q * jnp.sign(jnp.diag(r))[None, :]   # sign correction for uniqueness
    if rows < cols:
        q = q.T
    return q[:rows, :cols].astype(dtype)


def _reference(x, w1_t, b1, w2_t, b2):
    h = x @ w1_t + b1
    h = jnp.where(h >= 0, h, 0.1 * h)
    return h @ w2_t + b2


if __name__ == "__main__":
    # BiMLP(n_in=32, n_mid=64, n_out=32, dropout=0, activation=None)
    batch, seq = 2, 8
    n_in, n_mid, n_out = 32, 64, 32

    key = jax.random.PRNGKey(0)
    kx, k1, k2 = jax.random.split(key, 3)

    x = jax.random.normal(kx, (batch, seq, n_in), dtype=jnp.float32)

    # PyTorch: linear_1.weight is (n_mid, n_in), orthogonal; biases zero.
    w1 = _orthogonal(k1, n_mid, n_in)            # (n_mid, n_in)
    b1 = jnp.zeros((1, n_mid), jnp.float32)
    w2 = _orthogonal(k2, n_out, n_mid)           # (n_out, n_mid)
    b2 = jnp.zeros((1, n_out), jnp.float32)

    w1_t = jnp.asarray(w1.T)                     # (n_in, n_mid)
    w2_t = jnp.asarray(w2.T)                     # (n_mid, n_out)

    # ---- f32 run: exact parity with the PyTorch module at default dtype ----
    out = bimlp_forward(x, w1_t, b1, w2_t, b2)
    out = jax.block_until_ready(out)
    ref = _reference(x.reshape(-1, n_in), w1_t, b1, w2_t, b2).reshape(batch, seq, n_out)
    assert out.shape == (batch, seq, n_out)
    assert jnp.allclose(out, ref, atol=1e-5, rtol=1e-5), "f32 mismatch vs reference"

    # ---- bf16 I/O run: halves HBM traffic on the mem-bound path (f32 accum) ----
    xb = x.astype(jnp.bfloat16)
    w1b, b1b = w1_t.astype(jnp.bfloat16), b1.astype(jnp.bfloat16)
    w2b, b2b = w2_t.astype(jnp.bfloat16), b2.astype(jnp.bfloat16)
    out_bf16 = bimlp_forward(xb, w1b, b1b, w2b, b2b)
    out_bf16 = jax.block_until_ready(out_bf16)
    ref_bf16 = _reference(xb.astype(jnp.float32).reshape(-1, n_in),
                          w1b.astype(jnp.float32), b1,
                          w2b.astype(jnp.float32), b2).reshape(batch, seq, n_out)
    assert jnp.allclose(out_bf16.astype(jnp.float32), ref_bf16,
                        atol=5e-2, rtol=1e-1), "bf16 mismatch vs reference"

    print("KERNEL_OK")
</pallas_src>

<mosaic_0001>
module attributes {stable_mosaic.version = 11 : i64} {
  func.func @_bimlp_kernel(%arg0: i32, %arg1: memref<8x32xf32, #tpu.memory_space<vmem>>, %arg2: memref<32x64xf32, #tpu.memory_space<vmem>>, %arg3: memref<1x64xf32, #tpu.memory_space<vmem>>, %arg4: memref<64x32xf32, #tpu.memory_space<vmem>>, %arg5: memref<1x32xf32, #tpu.memory_space<vmem>>, %arg6: memref<8x32xf32, #tpu.memory_space<vmem>>) attributes {dimension_semantics = [#tpu.dimension_semantics<parallel>], iteration_bounds = array<i64: 2>, scalar_prefetch = 0 : i64, scratch_operands = 0 : i64, tpu.core_type = #tpu.core_type<tc>, window_params = [{transform_indices = @transform_0, window_bounds = array<i64: 8, 32>}, {pipeline_mode = #tpu.pipeline_mode<synchronous>, transform_indices = @transform_1, window_bounds = array<i64: 32, 64>}, {pipeline_mode = #tpu.pipeline_mode<synchronous>, transform_indices = @transform_2, window_bounds = array<i64: 1, 64>}, {pipeline_mode = #tpu.pipeline_mode<synchronous>, transform_indices = @transform_3, window_bounds = array<i64: 64, 32>}, {pipeline_mode = #tpu.pipeline_mode<synchronous>, transform_indices = @transform_4, window_bounds = array<i64: 1, 32>}, {transform_indices = @transform_5, window_bounds = array<i64: 8, 32>}]} {
    %c0 = arith.constant 0 : index
    %c0_0 = arith.constant 0 : index
    %0 = vector.load %arg1[%c0, %c0_0] : memref<8x32xf32, #tpu.memory_space<vmem>>, vector<8x32xf32>
    %c0_1 = arith.constant 0 : index
    %c0_2 = arith.constant 0 : index
    %1 = vector.load %arg2[%c0_1, %c0_2] : memref<32x64xf32, #tpu.memory_space<vmem>>, vector<32x64xf32>
    %cst = arith.constant dense<0.000000e+00> : vector<8x64xf32>
    %2 = tpu.matmul %0, %1, %cst {dimension_numbers = #tpu.dot_dimension_numbers<[1], [0], [0], [1], [0, 0, 1, 1], [], []>} : vector<8x32xf32>, vector<32x64xf32>, vector<8x64xf32> -> vector<8x64xf32>
    %c0_3 = arith.constant 0 : index
    %c0_4 = arith.constant 0 : index
    %3 = vector.load %arg3[%c0_3, %c0_4] : memref<1x64xf32, #tpu.memory_space<vmem>>, vector<1x64xf32>
    %4 = vector.broadcast %3 : vector<1x64xf32> to vector<8x64xf32>
    %5 = arith.addf %2, %4 : vector<8x64xf32>
    %cst_5 = arith.constant 0.000000e+00 : f32
    %6 = vector.broadcast %cst_5 : f32 to vector<8x64xf32>
    %7 = arith.cmpf oge, %5, %6 : vector<8x64xf32>
    %cst_6 = arith.constant 1.000000e-01 : f32
    %8 = vector.broadcast %cst_6 : f32 to vector<8x64xf32>
    %9 = arith.mulf %8, %5 : vector<8x64xf32>
    %10 = arith.select %7, %5, %9 : vector<8x64xi1>, vector<8x64xf32>
    %c0_7 = arith.constant 0 : index
    %c0_8 = arith.constant 0 : index
    %11 = vector.load %arg4[%c0_7, %c0_8] : memref<64x32xf32, #tpu.memory_space<vmem>>, vector<64x32xf32>
    %cst_9 = arith.constant dense<0.000000e+00> : vector<8x32xf32>
    %12 = tpu.matmul %10, %11, %cst_9 {dimension_numbers = #tpu.dot_dimension_numbers<[1], [0], [0], [1], [0, 0, 1, 1], [], []>} : vector<8x64xf32>, vector<64x32xf32>, vector<8x32xf32> -> vector<8x32xf32>
    %c0_10 = arith.constant 0 : index
    %c0_11 = arith.constant 0 : index
    %13 = vector.load %arg5[%c0_10, %c0_11] : memref<1x32xf32, #tpu.memory_space<vmem>>, vector<1x32xf32>
    %14 = vector.broadcast %13 : vector<1x32xf32> to vector<8x32xf32>
    %15 = arith.addf %12, %14 : vector<8x32xf32>
    %c0_12 = arith.constant 0 : index
    %c0_13 = arith.constant 0 : index
    %16 = vector.load %arg6[%c0_12, %c0_13] : memref<8x32xf32, #tpu.memory_space<vmem>>, vector<8x32xf32>
    tpu.vector_store %arg6[%c0_12, %c0_13], %15 {strides = array<i32>} : memref<8x32xf32, #tpu.memory_space<vmem>>, vector<8x32xf32>,
    return
  }
  func.func @transform_0(%arg0: i32) -> (i32, i32) {
    %c0_i32 = arith.constant 0 : i32
    %c0_i32_0 = arith.constant 0 : i32
    return %arg0, %c0_i32 : i32, i32
  }
  func.func @transform_1(%arg0: i32) -> (i32, i32) {
    %c0_i32 = arith.constant 0 : i32
    %c0_i32_0 = arith.constant 0 : i32
    %c0_i32_1 = arith.constant 0 : i32
    return %c0_i32, %c0_i32_0 : i32, i32
  }
  func.func @transform_2(%arg0: i32) -> (i32, i32) {
    %c0_i32 = arith.constant 0 : i32
    %c0_i32_0 = arith.constant 0 : i32
    %c0_i32_1 = arith.constant 0 : i32
    return %c0_i32, %c0_i32_0 : i32, i32
  }
  func.func @transform_3(%arg0: i32) -> (i32, i32) {
    %c0_i32 = arith.constant 0 : i32
    %c0_i32_0 = arith.constant 0 : i32
    %c0_i32_1 = arith.constant 0 : i32
    return %c0_i32, %c0_i32_0 : i32, i32
  }
  func.func @transform_4(%arg0: i32) -> (i32, i32) {
    %c0_i32 = arith.constant 0 : i32
    %c0_i32_0 = arith.constant 0 : i32
    %c0_i32_1 = arith.constant 0 : i32
    return %c0_i32, %c0_i32_0 : i32, i32
  }
  func.func @transform_5(%arg0: i32) -> (i32, i32) {
    %c0_i32 = arith.constant 0 : i32
    %c0_i32_0 = arith.constant 0 : i32
    return %arg0, %c0_i32 : i32, i32
  }
}

</mosaic_0001>

<llo_original>
// kernel: bimlp_forward.1
$region0: #{bimlp_forward.1}
  #allocation0 [shape = 'u32[]', space=smem, size = 0x4, offset = 0x4, fixed_abs, tag = 'smem constant byte address 0x4 - core index']
  #allocation1 [shape = 'u32[72,128]{1,0:T(1,128)}', space=vmem, size = 0x9000, scoped, tag = 'internal scratch']
  %s0 = inlined_call_operand.vmem [shape: f32[16,32], index: 0, kind: input, shape index: {}]
  %s1 = inlined_call_operand.vmem [shape: f32[32,64], index: 1, kind: input, shape index: {}]
  %s2 = inlined_call_operand.vmem [shape: f32[1,64], index: 2, kind: input, shape index: {}]
  %s3 = inlined_call_operand.vmem [shape: f32[64,32], index: 3, kind: input, shape index: {}]
  %s4 = inlined_call_operand.vmem [shape: f32[1,32], index: 4, kind: input, shape index: {}]
  %s5 = inlined_call_operand.hbm [shape: f32[16,32], index: 5, kind: output, shape index: {}]
  %s6 = sld [smem:[#allocation0]]
  $region53: #{bimlp_forward.1} parent=0
    _
  %s8 = ssub.s32 1, %s6
  %s9 = scalar_select 0, %s8, %s6
  $region1: #{bimlp_forward.1} parent=0
    #allocation2 [shape = 'u8[8192]{0}', space=vmem, size = 0x2000, scoped, tag = 'output window, operand 0']
    #allocation3 [shape = 's32[2]{0}', space=sflag, size = 0x8, scoped, tag = 'scoped memory for bimlp_forward.1']
    %10 = vsyncpa [#allocation3], 0
    %s11 = scalar_lea.sflag [#allocation3], 1
    %12 = vsyncpa %s11, 0
    loop: start=0, step=1, limit=4
    $region2: #{bimlp_forward.1} parent=1 // loop_pre_header
      _
    $region3: #{bimlp_forward.1} parent=1 // loop_header
      %s14 = sphi 0, %s18
      %p15 = scmp.ge.s32.totalorder %s14, 4
      %s24 = sphi 0, %s26
      %s27 = sphi 0, %s24
      %s28 = sphi 0, %s27
      %s44 = sphi 0, %s28
      %s48 = sphi 0, %s48
      %s50 = sphi 0, %s48
      %s51 = sphi 0, %s50
      %s65 = sphi 0, %s51
      %s69 = sphi 0, %s69
      %s71 = sphi 0, %s69
      %s72 = sphi 0, %s71
      %s86 = sphi 0, %s72
      %s90 = sphi 0, %s90
      %s92 = sphi 0, %s90
      %s93 = sphi 0, %s92
      %s107 = sphi 0, %s93
      %s111 = sphi 0, %s111
      %s113 = sphi 0, %s111
      %s114 = sphi 0, %s113
      %s128 = sphi 0, %s114
      %s134 = sphi 0, %s136
      %s137 = sphi 0, %s134
      %s138 = sphi 0, %s137
      %s154 = sphi 0, %s138
    $region4: #{bimlp_forward.1} parent=1 // loop_header_branch
      %17 = sbr.rel (%p15) target = $region8
    $region5: #{bimlp_forward.1} parent=1 // loop_body
      %s19 = ssub.s32 %s14, 1
      %s20 = ssub.s32 %s14, 2
      %s21 = sadd.s32 %s14, 1
      %s22 = ssub.s32 %s14, %s21
      %p23 = scmp.eq.s32.totalorder %s22, 0
      %s25 = sadd.s32 %s24, 1
      %s26 = scalar_select %p23, %s24, %s25
      %p29 = pneg %p23
      %p30 = scmp.eq.s32.totalorder %s14, 1
      %p31 = por %p29, %p30
      %p32 = scmp.ne.s32.totalorder %s24, %s27
      %p33 = scmp.eq.s32.totalorder %s14, 0
      %p34 = por %p32, %p33
      %p35 = scmp.ne.s32.totalorder %s24, %s27
      %p36 = scmp.eq.s32.totalorder %s19, 1
      %p37 = por %p35, %p36
      %p38 = scmp.ne.s32.totalorder %s27, %s28
      %p39 = scmp.eq.s32.totalorder %s19, 0
      %p40 = por %p38, %p39
      %p41 = scmp.ne.s32.totalorder %s27, %s28
      %p42 = scmp.eq.s32.totalorder %s20, 1
      %p43 = por %p41, %p42
      %p45 = scmp.ne.s32.totalorder %s28, %s44
      %p46 = scmp.eq.s32.totalorder %s20, 0
      %p47 = por %p45, %p46
      %s49 = sadd.s32 %s48, 1
      %p52 = scmp.eq.s32.totalorder %s14, 1
      %p53 = scmp.ne.s32.totalorder %s48, %s50
      %p54 = scmp.eq.s32.totalorder %s14, 0
      %p55 = por %p53, %p54
      %p56 = scmp.ne.s32.totalorder %s48, %s50
      %p57 = scmp.eq.s32.totalorder %s19, 1
      %p58 = por %p56, %p57
      %p59 = scmp.ne.s32.totalorder %s50, %s51
      %p60 = scmp.eq.s32.totalorder %s19, 0
      %p61 = por %p59, %p60
      %p62 = scmp.ne.s32.totalorder %s50, %s51
      %p63 = scmp.eq.s32.totalorder %s20, 1
      %p64 = por %p62, %p63
      %p66 = scmp.ne.s32.totalorder %s51, %s65
      %p67 = scmp.eq.s32.totalorder %s20, 0
      %p68 = por %p66, %p67
      %s70 = sadd.s32 %s69, 1
      %p73 = scmp.eq.s32.totalorder %s14, 1
      %p74 = scmp.ne.s32.totalorder %s69, %s71
      %p75 = scmp.eq.s32.totalorder %s14, 0
      %p76 = por %p74, %p75
      %p77 = scmp.ne.s32.totalorder %s69, %s71
      %p78 = scmp.eq.s32.totalorder %s19, 1
      %p79 = por %p77, %p78
      %p80 = scmp.ne.s32.totalorder %s71, %s72
      %p81 = scmp.eq.s32.totalorder %s19, 0
      %p82 = por %p80, %p81
      %p83 = scmp.ne.s32.totalorder %s71, %s72
      %p84 = scmp.eq.s32.totalorder %s20, 1
      %p85 = por %p83, %p84
      %p87 = scmp.ne.s32.totalorder %s72, %s86
      %p88 = scmp.eq.s32.totalorder %s20, 0
      %p89 = por %p87, %p88
      %s91 = sadd.s32 %s90, 1
      %p94 = scmp.eq.s32.totalorder %s14, 1
      %p95 = scmp.ne.s32.totalorder %s90, %s92
      %p96 = scmp.eq.s32.totalorder %s14, 0
      %p97 = por %p95, %p96
      %p98 = scmp.ne.s32.totalorder %s90, %s92
      %p99 = scmp.eq.s32.totalorder %s19, 1
      %p100 = por %p98, %p99
      %p101 = scmp.ne.s32.totalorder %s92, %s93
      %p102 = scmp.eq.s32.totalorder %s19, 0
      %p103 = por %p101, %p102
      %p104 = scmp.ne.s32.totalorder %s92, %s93
      %p105 = scmp.eq.s32.totalorder %s20, 1
      %p106 = por %p104, %p105
      %p108 = scmp.ne.s32.totalorder %s93, %s107
      %p109 = scmp.eq.s32.totalorder %s20, 0
      %p110 = por %p108, %p109
      %s112 = sadd.s32 %s111, 1
      %p115 = scmp.eq.s32.totalorder %s14, 1
      %p116 = scmp.ne.s32.totalorder %s111, %s113
      %p117 = scmp.eq.s32.totalorder %s14, 0
      %p118 = por %p116, %p117
      %p119 = scmp.ne.s32.totalorder %s111, %s113
      %p120 = scmp.eq.s32.totalorder %s19, 1
      %p121 = por %p119, %p120
      %p122 = scmp.ne.s32.totalorder %s113, %s114
      %p123 = scmp.eq.s32.totalorder %s19, 0
      %p124 = por %p122, %p123
      %p125 = scmp.ne.s32.totalorder %s113, %s114
      %p126 = scmp.eq.s32.totalorder %s20, 1
      %p127 = por %p125, %p126
      %p129 = scmp.ne.s32.totalorder %s114, %s128
      %p130 = scmp.eq.s32.totalorder %s20, 0
      %p131 = por %p129, %p130
      %s132 = ssub.s32 %s14, %s21
      %p133 = scmp.eq.s32.totalorder %s132, 0
      %s135 = sadd.s32 %s134, 1
      %s136 = scalar_select %p133, %s134, %s135
      %p139 = pneg %p133
      %p140 = scmp.eq.s32.totalorder %s14, 1
      %p141 = por %p139, %p140
      %p142 = scmp.ne.s32.totalorder %s134, %s137
      %p143 = scmp.eq.s32.totalorder %s14, 0
      %p144 = por %p142, %p143
      %p145 = scmp.ne.s32.totalorder %s134, %s137
      %p146 = scmp.eq.s32.totalorder %s19, 1
      %p147 = por %p145, %p146
      %p148 = scmp.ne.s32.totalorder %s137, %s138
      %p149 = scmp.eq.s32.totalorder %s19, 0
      %p150 = por %p148, %p149
      %p151 = scmp.ne.s32.totalorder %s137, %s138
      %p152 = scmp.eq.s32.totalorder %s20, 1
      %p153 = por %p151, %p152
      %p155 = scmp.ne.s32.totalorder %s138, %s154
      %p156 = scmp.eq.s32.totalorder %s20, 0
      %p157 = por %p155, %p156
      %p158 = scmp.le.s32.totalorder 1, %s14
      %p159 = scmp.lt.s32.totalorder %s14, 3
      %p160 = pnand %p158, %p159
      %p161 = pneg %p160
      // Predicated region
      $region9: #{bimlp_forward.1} parent=5 // pred_check
        _
      $region10: #{bimlp_forward.1} parent=5 // pred_check_branch
        %163 = sbr.rel (%p160) target = $region12
      $region11: #{bimlp_forward.1} parent=5 // pred_region
        %s164 = ssub.s32 %s14, 1
        // Predicated region
        $region13: #{bimlp_forward.1} parent=11 // pred_check
          %p165 = pneg %p61
        $region14: #{bimlp_forward.1} parent=11 // pred_check_branch
          %167 = sbr.rel (%p165) target = $region16
        $region15: #{bimlp_forward.1} parent=11 // pred_region
          _
        $region16: #{bimlp_forward.1} parent=11 // pred_fallthru
          _
        // Predicated region
        $region17: #{bimlp_forward.1} parent=11 // pred_check
          %p168 = pneg %p82
        $region18: #{bimlp_forward.1} parent=11 // pred_check_branch
          %170 = sbr.rel (%p168) target = $region20
        $region19: #{bimlp_forward.1} parent=11 // pred_region
          _
        $region20: #{bimlp_forward.1} parent=11 // pred_fallthru
          _
        // Predicated region
        $region21: #{bimlp_forward.1} parent=11 // pred_check
          %p171 = pneg %p103
        $region22: #{bimlp_forward.1} parent=11 // pred_check_branch
          %173 = sbr.rel (%p171) target = $region24
        $region23: #{bimlp_forward.1} parent=11 // pred_region
          _
        $region24: #{bimlp_forward.1} parent=11 // pred_fallthru
          _
        // Predicated region
        $region25: #{bimlp_forward.1} parent=11 // pred_check
          %p174 = pneg %p124
        $region26: #{bimlp_forward.1} parent=11 // pred_check_branch
          %176 = sbr.rel (%p174) target = $region28
        $region27: #{bimlp_forward.1} parent=11 // pred_region
          _
        $region28: #{bimlp_forward.1} parent=11 // pred_fallthru
          _
      $region12: #{bimlp_forward.1} parent=5 // pred_fallthru
        _
      %p177 = scmp.lt.s32.totalorder %s14, 2
      // Predicated region
      $region29: #{bimlp_forward.1} parent=5 // pred_check
        %p178 = pneg %p177
      $region30: #{bimlp_forward.1} parent=5 // pred_check_branch
        %180 = sbr.rel (%p178) target = $region32
      $region31: #{bimlp_forward.1} parent=5 // pred_region
        // Predicated region
        $region33: #{bimlp_forward.1} parent=31 // pred_check
          %p181 = pneg %p34
        $region34: #{bimlp_forward.1} parent=31 // pred_check_branch
          %183 = sbr.rel (%p181) target = $region36
        $region35: #{bimlp_forward.1} parent=31 // pred_region
          %p184 = scmp.lt.s32.totalorder %s14, 1
          %s185 = scalar_select %p184, %s14, 1
          %s186 = smul.addr %s185, 8
          %s187 = scalar_lea.vmem %s0, %s186
        $region36: #{bimlp_forward.1} parent=31 // pred_fallthru
          _
      $region32: #{bimlp_forward.1} parent=5 // pred_fallthru
        _
      %p188 = scmp.le.s32.totalorder 1, %s14
      %p189 = scmp.lt.s32.totalorder %s14, 3
      %p190 = pnand %p188, %p189
      %p191 = pneg %p190
      // Predicated region
      $region37: #{bimlp_forward.1} parent=5 // pred_check
        _
      $region38: #{bimlp_forward.1} parent=5 // pred_check_branch
        %193 = sbr.rel (%p190) target = $region40
      $region39: #{bimlp_forward.1} parent=5 // pred_region
        %s194 = ssub.s32 %s14, 1
        %p195 = scmp.lt.s32.totalorder %s19, 1
        %s196 = scalar_select %p195, %s19, 1
        %s197 = smul.addr %s196, 8
        %s198 = scalar_lea.vmem %s0, %s197
        %p199 = pneg %p40
        %p200 = pneg %p37
        %p201 = pneg %p61
        %p202 = pneg %p58
        %p203 = pneg %p82
        %p204 = pneg %p79
        %p205 = pneg %p103
        %p206 = pneg %p100
        %p207 = pneg %p124
        %p208 = pneg %p121
        %p209 = pneg %p150
        %p210 = pneg %p147
        %s211 = sand.u32 %s137, 1
        %s212 = scalar_lea.sflag [#allocation3], %s211
        %s213 = sand.u32 %s137, 1
        %s214 = smul.addr %s213, 8
        %s215 = scalar_lea.vmem [#allocation2], %s214
        %p216 = scmp.lt.s32.totalorder %s19, 1
        %s217 = scalar_select %p216, %s19, 1
        %s218 = smul.addr %s217, 8
        %s219 = scalar_lea.vmem %s0, %s218
        %v220 = vld [vmem:[%s219] sm:$0xff]
        %v221 = vld [vmem:[%s1] sm:$0xff]
        %v222 = vld [vmem:[%s1 + $0x8] sm:$0xff]
        %v223 = vld [vmem:[%s1 + $0x10] sm:$0xff]
        %v224 = vld [vmem:[%s1 + $0x18] sm:$0xff]
        %v225 = vld [vmem:[%s2] sm:$0x1]
        %v227 = vperm.slane %v225, 0
        %vm229 = vcmask 261120
        %v231 = vsel %vm229, %v220, 0
        %233 = vmatpush.msra.mxu0 0.0
        %234 = vmatpush.msra.mxu0 0.0
        %235 = vmatpush.msra.mxu0 0.0
        %236 = vmatpush.msra.mxu0 0.0
        %237 = vmatpush.msra.mxu0 0.0
        %238 = vmatpush.msra.mxu0 0.0
        %239 = vmatpush.msra.mxu0 0.0
        %240 = vmatpush.msra.mxu0 0.0
        %241 = vmatpush.msra.mxu0 0.0
        %242 = vmatpush.msra.mxu0 0.0
        %243 = vmatpush.msra.mxu0 0.0
        %244 = vmatpush.msra.mxu0 0.0
        %245 = vmatpush.msra.mxu0 %v224
        %246 = vmatpush.msra.mxu0 %v223
        %247 = vmatpush.msra.mxu0 %v222
        %248 = vmatpush.msra.mxu0 %v221
        %249 = vmatmul.f32.gmra.mxu0 %v231
        %v250 = vpop.f32.mrf.mxu0
        %v251 = vadd.f32 %v227, %v250
        %252 = vdwg.mxu0
        %vm253 = vcmp.ge.f32.partialorder %v251, 0.0
        %v254 = vmul.f32 %v251, 0.1
        %v255 = vsel %vm253, %v251, %v254
        %v256 = vld [vmem:[%s3] sm:$0xff]
        %v257 = vld [vmem:[%s3 + $0x8] sm:$0xff]
        %v258 = vld [vmem:[%s3 + $0x10] sm:$0xff]
        %v259 = vld [vmem:[%s3 + $0x18] sm:$0xff]
        %v260 = vld [vmem:[%s3 + $0x20] sm:$0xff]
        %v261 = vld [vmem:[%s3 + $0x28] sm:$0xff]
        %v262 = vld [vmem:[%s3 + $0x30] sm:$0xff]
        %v263 = vld [vmem:[%s3 + $0x38] sm:$0xff]
        %v264 = vld [vmem:[%s4] sm:$0x1]
        %v266 = vperm.slane %v264, 0
        %vm268 = vcmask 523264
        %v270 = vsel %vm268, %v255, 0
        %272 = vmatpush.msra.mxu0 0.0
        %273 = vmatpush.msra.mxu0 0.0
        %274 = vmatpush.msra.mxu0 0.0
        %275 = vmatpush.msra.mxu0 0.0
        %276 = vmatpush.msra.mxu0 0.0
        %277 = vmatpush.msra.mxu0 0.0
        %278 = vmatpush.msra.mxu0 0.0
        %279 = vmatpush.msra.mxu0 0.0
        %280 = vmatpush.msra.mxu0 %v263
        %281 = vmatpush.msra.mxu0 %v262
        %282 = vmatpush.msra.mxu0 %v261
        %283 = vmatpush.msra.mxu0 %v260
        %284 = vmatpush.msra.mxu0 %v259
        %285 = vmatpush.msra.mxu0 %v258
        %286 = vmatpush.msra.mxu0 %v257
        %287 = vmatpush.msra.mxu0 %v256
        %288 = vmatmul.f32.gmra.mxu0 %v270
        %v289 = vpop.f32.mrf.mxu0
        %v290 = vadd.f32 %v266, %v289
        %291 = vdwg.mxu0
        %292 = vst.msk [vmem:[%s215] sm:$0xff] %vm229, %v290
        %s293 = sand.u32 %s137, 1
        %s294 = scalar_lea.sflag [#allocation3], %s293
        %s295 = sand.u32 %s137, 1
        %s296 = smul.addr %s295, 8
        %s297 = scalar_lea.vmem [#allocation2], %s296
        // Predicated region
        $region41: #{bimlp_forward.1} parent=39 // pred_check
          %p298 = pneg %p147
        $region42: #{bimlp_forward.1} parent=39 // pred_check_branch
          %300 = sbr.rel (%p298) target = $region44
        $region43: #{bimlp_forward.1} parent=39 // pred_region
          %302 = vsyncadd %s294, 0
          %s303 = smul.addr %s19, 8
          %s304 = scalar_lea.hbm %s5, %s303
          %s306 = sshll.u32 %s297, 4
          %s307 = int_to_ptr.vmem [resolvable:$true] %s306
          %s308 = sshll.u32 %s304, 4
          %s309 = int_to_ptr.hbm [resolvable:$true] %s308
          %311 = dma.vmem_to_hbm [thread:$0]  %s307, 128, %s309, %s294
        $region44: #{bimlp_forward.1} parent=39 // pred_fallthru
          _
      $region40: #{bimlp_forward.1} parent=5 // pred_fallthru
        _
      %p312 = scmp.le.s32.totalorder 2, %s14
      // Predicated region
      $region45: #{bimlp_forward.1} parent=5 // pred_check
        %p313 = pneg %p312
      $region46: #{bimlp_forward.1} parent=5 // pred_check_branch
        %315 = sbr.rel (%p313) target = $region48
      $region47: #{bimlp_forward.1} parent=5 // pred_region
        %s316 = ssub.s32 %s14, 2
        // Predicated region
        $region49: #{bimlp_forward.1} parent=47 // pred_check
          %p317 = pneg %p153
        $region50: #{bimlp_forward.1} parent=47 // pred_check_branch
          %319 = sbr.rel (%p317) target = $region52
        $region51: #{bimlp_forward.1} parent=47 // pred_region
          %s320 = sand.u32 %s138, 1
          %s321 = scalar_lea.sflag [#allocation3], %s320
          %s322 = sand.u32 %s138, 1
          %s323 = smul.addr %s322, 8
          %s324 = scalar_lea.vmem [#allocation2], %s323
          %326 = dma.done %s321, 128
        $region52: #{bimlp_forward.1} parent=47 // pred_fallthru
          _
      $region48: #{bimlp_forward.1} parent=5 // pred_fallthru
        _
    $region6: #{bimlp_forward.1} parent=1 // loop_footer
      %s18 = sadd.s32 1, %s14
    $region7: #{bimlp_forward.1} parent=1 // loop_footer_branch
      %13 = sbr.rel target = $region3
    $region8: #{bimlp_forward.1} parent=1 // loop_exit
      _
    %327 = vsyncpa [#allocation3], 1
    %s328 = scalar_lea.sflag [#allocation3], 1
    %329 = vsyncpa %s328, 1

</llo_original>
